<compile_context>
chip_gen: v5e
topology: v5e:2x2
jax: 0.10.0
libtpu: 0.0.40
codegen_flags: <defaults>
</compile_context>

<pallas_src>
import functools

import jax
import jax.numpy as jnp
from jax import lax
from jax.experimental import pallas as pl
from jax.experimental.pallas import tpu as pltpu


def _round_up(a, b):
    return ((a + b - 1) // b) * b


def _vmem_capacity_bytes():
    """Physical VMEM per TensorCore (128 MiB on v5e/v6e, 64 MiB on v7x)."""
    try:
        return int(pltpu.get_tpu_info().vmem_capacity_bytes)
    except Exception:
        return 64 << 20          # conservative fallback (v7x per-core VMEM)


def _pick_rows_per_block(R, HW, const_bytes):
    """Rows per block: as large as comfortably fits (double-buffered in+out +
    the resident constant operand), capped at ~8 MiB of input, and split into
    >=2 real blocks when possible so both v7x TensorCores get work."""
    vmem_cap = _vmem_capacity_bytes()
    # double-buffered input block + double-buffered output block = 4*rb*HW*4 B
    budget = max(1 << 20, int(vmem_cap * 0.45) - 2 * const_bytes - (2 << 20))
    rb_cap = max(8, (budget // (4 * HW * 4)) // 8 * 8)
    rb_cap = min(rb_cap, max(8, ((8 << 20) // (HW * 4)) // 8 * 8))
    if R <= 8:
        rb = R                                   # one small block, no fake rows
    else:
        rb = max(8, min(rb_cap, _round_up(pl.cdiv(R, 2), 8)))
    return rb, vmem_cap


def _tap_masks_and_shifts(wk, H, W):
    """Per-tap (weight * validity) masks flattened to (k*k, HW) plus the static
    circular lane shift per tap.  The masks zero every wrapped-around /
    out-of-image read, so rolling the *unpadded* flat row reproduces exact zero
    'same' padding."""
    k = wk.shape[0]
    p = (k - 1) // 2
    HW = H * W
    hh = jnp.arange(H)
    ww = jnp.arange(W)
    masks, shifts = [], []
    for i in range(k):
        di = i - p
        hv = ((hh + di >= 0) & (hh + di < H)).astype(jnp.float32)        # (H,)
        for j in range(k):
            dj = j - p
            wv = ((ww + dj >= 0) & (ww + dj < W)).astype(jnp.float32)    # (W,)
            masks.append((wk[i, j] * (hv[:, None] * wv[None, :])).reshape(HW))
            # need rolled[q] = x[(q + di*W + dj) mod HW]  ==  np.roll(x, -(di*W+dj))
            shifts.append((-(di * W + dj)) % HW)
    return jnp.stack(masks, axis=0), shifts       # (k*k, HW), python ints


def _transfer_matrix(wk, H, W):
    """Banded (HW, HW) matrix with weights and zero padding baked in, so that
    out[r, q] = sum_p x[r, p] * T[p, q]  (depthwise shared-kernel conv)."""
    k = wk.shape[0]
    p = (k - 1) // 2
    HW = H * W
    q = jnp.arange(HW)
    hh = q // W
    ww = q % W
    T = jnp.zeros((HW, HW), jnp.float32)
    for i in range(k):
        di = i - p
        for j in range(k):
            dj = j - p
            valid = (hh + di >= 0) & (hh + di < H) & (ww + dj >= 0) & (ww + dj < W)
            hit = (q[:, None] == (q + di * W + dj)[None, :]) & valid[None, :]
            T = T + wk[i, j] * hit.astype(jnp.float32)
    return T


def _mxu_kernel(x_ref, t_ref, o_ref):
    # x_ref: (rb, HW)  t_ref: (HW, HW)  o_ref: (rb, HW)
    # One aligned full-tile load; all k^2 taps fused into a single banded
    # matmul on the otherwise-idle MXU.  f32 accumulation keeps precision.
    o_ref[...] = jnp.dot(x_ref[...], t_ref[...],
                         preferred_element_type=jnp.float32)


def _vpu_kernel(x_ref, wm_ref, o_ref, *, kk, shifts, strip, nstrips, HW):
    # x_ref: (rb, HW)  wm_ref: (kk, strip, HW) pre-broadcast weighted masks
    # o_ref: (rb, HW)
    # Process `strip`-row slabs so the k^2-tap accumulator stays resident in
    # vregs across all taps; per-tap data movement is a lane roll (XLU slot).
    def slab(s, carry):
        r0 = pl.multiple_of(s * strip, strip)
        xs = x_ref[pl.ds(r0, strip), :]                       # (strip, HW)
        xt = xs if shifts[0] == 0 else pltpu.roll(xs, shifts[0], 1)
        acc = wm_ref[0] * xt
        for t in range(1, kk):                                # static unrolled taps
            xt = xs if shifts[t] == 0 else pltpu.roll(xs, shifts[t], 1)
            acc = acc + wm_ref[t] * xt
        o_ref[pl.ds(r0, strip), :] = acc
        return carry

    lax.fori_loop(0, nstrips, slab, 0, unroll=2 if nstrips > 1 else 1)


def share_sep_conv(x_nchw, weight, *, force_path=None):
    """ShareSepConv forward.

    x_nchw: (N, C, H, W) float32.
    weight: (1, 1, k, k) float32 (the shared nn.Parameter), k odd.
    force_path: None (auto) | "mxu" | "vpu".
    Returns (N, C, H, W) float32.
    """
    N, C, H, W = x_nchw.shape
    k = weight.shape[-1]
    assert k % 2 == 1, "kernel size should be odd"
    kk = k * k
    HW = H * W
    R = N * C

    # No padding / extra HBM pass: plain contiguous reshape, lane-dense rows.
    x_flat = x_nchw.reshape(R, HW).astype(jnp.float32)
    wk = weight.reshape(k, k).astype(jnp.float32)

    # Small images: fold everything into an (HW, HW) transfer matrix -> MXU.
    use_mxu = HW * HW * 4 <= (4 << 20)
    if force_path == "vpu":
        use_mxu = False
    elif force_path == "mxu":
        use_mxu = True

    const_bytes = HW * HW * 4 if use_mxu else kk * 8 * HW * 4
    rb, vmem_cap = _pick_rows_per_block(R, HW, const_bytes)
    G = pl.cdiv(R, rb)                       # ragged last block handled by Pallas
    vmem_limit = int(min((vmem_cap * 3) // 4, 96 << 20))
    cparams = pltpu.CompilerParams(
        dimension_semantics=("parallel",),
        vmem_limit_bytes=vmem_limit,
    )

    if use_mxu:
        tmat = _transfer_matrix(wk, H, W)                       # (HW, HW)
        out_flat = pl.pallas_call(
            _mxu_kernel,
            out_shape=jax.ShapeDtypeStruct((R, HW), jnp.float32),
            grid_spec=pltpu.PrefetchScalarGridSpec(
                num_scalar_prefetch=0,
                grid=(G,),
                in_specs=[
                    pl.BlockSpec((rb, HW), lambda g: (g, 0)),
                    # constant operand: same block every step -> never re-DMA'd
                    pl.BlockSpec((HW, HW), lambda g: (0, 0)),
                ],
                out_specs=pl.BlockSpec((rb, HW), lambda g: (g, 0)),
            ),
            compiler_params=cparams,
        )(x_flat, tmat)
    else:
        wmask, shifts = _tap_masks_and_shifts(wk, H, W)         # (kk, HW)
        strip = 8 if rb % 8 == 0 else rb
        nstrips = rb // strip
        # Pre-broadcast the mask rows to strip height: the per-tap multiply is a
        # plain aligned load, no per-tap broadcast_in_dim inside the kernel.
        wm_b = jnp.broadcast_to(wmask[:, None, :], (kk, strip, HW))
        kern = functools.partial(_vpu_kernel, kk=kk, shifts=tuple(shifts),
                                 strip=strip, nstrips=nstrips, HW=HW)
        out_flat = pl.pallas_call(
            kern,
            out_shape=jax.ShapeDtypeStruct((R, HW), jnp.float32),
            grid_spec=pltpu.PrefetchScalarGridSpec(
                num_scalar_prefetch=0,
                grid=(G,),
                in_specs=[
                    pl.BlockSpec((rb, HW), lambda g: (g, 0)),
                    pl.BlockSpec((kk, strip, HW), lambda g: (0, 0, 0)),
                ],
                out_specs=pl.BlockSpec((rb, HW), lambda g: (g, 0)),
            ),
            compiler_params=cparams,
        )(x_flat, wm_b)

    return out_flat.reshape(N, C, H, W)


def _reference(x, weight_kk):
    """Pure-JAX reference: depthwise conv2d with the shared k x k kernel."""
    N, C, H, W = x.shape
    k = weight_kk.shape[0]
    p = (k - 1) // 2
    w = jnp.broadcast_to(weight_kk[None, None], (C, 1, k, k))
    return jax.lax.conv_general_dilated(
        x, w, window_strides=(1, 1), padding=[(p, p), (p, p)],
        dimension_numbers=("NCHW", "OIHW", "NCHW"),
        feature_group_count=C, precision=jax.lax.Precision.HIGHEST)


if __name__ == "__main__":
    key = jax.random.PRNGKey(0)
    kx, kw = jax.random.split(key)

    N, C, H, W = 2, 4, 16, 16
    ks = 3
    x = jax.random.normal(kx, (N, C, H, W), jnp.float32)

    # 1) Weight exactly as the module initializes it (delta kernel) -> identity.
    w_delta = jnp.zeros((1, 1, ks, ks), jnp.float32).at[0, 0, ks // 2, ks // 2].set(1.0)
    out_id = jax.block_until_ready(share_sep_conv(x, w_delta))
    assert out_id.shape == x.shape
    assert jnp.allclose(out_id, x, atol=1e-4), float(jnp.max(jnp.abs(out_id - x)))

    # 2) A "trained" (non-trivial) shared weight, checked against lax depthwise conv.
    w_rand = w_delta + 0.1 * jax.random.normal(kw, (1, 1, ks, ks), jnp.float32)
    ref = _reference(x, w_rand[0, 0])

    # auto path (MXU transfer-matrix for this small HW; f32 MXU accumulation).
    out_mxu = jax.block_until_ready(share_sep_conv(x, w_rand))
    assert out_mxu.shape == ref.shape
    assert jnp.allclose(out_mxu, ref, atol=1e-4, rtol=1e-4), \
        float(jnp.max(jnp.abs(out_mxu - ref)))

    # large-HW path (k^2 VPU taps via pltpu.roll + masks), forced for coverage.
    out_vpu = jax.block_until_ready(share_sep_conv(x, w_rand, force_path="vpu"))
    assert jnp.allclose(out_vpu, ref, atol=1e-5, rtol=1e-5), \
        float(jnp.max(jnp.abs(out_vpu - ref)))

    print("KERNEL_OK")
</pallas_src>

<mosaic_0001>
module attributes {stable_mosaic.version = 11 : i64} {
  func.func @_mxu_kernel(%arg0: i32, %arg1: memref<8x256xf32, #tpu.memory_space<vmem>>, %arg2: memref<256x256xf32, #tpu.memory_space<vmem>>, %arg3: memref<8x256xf32, #tpu.memory_space<vmem>>) attributes {dimension_semantics = [#tpu.dimension_semantics<parallel>], iteration_bounds = array<i64: 1>, scalar_prefetch = 0 : i64, scratch_operands = 0 : i64, tpu.core_type = #tpu.core_type<tc>, window_params = [{transform_indices = @transform_0, window_bounds = array<i64: 8, 256>}, {pipeline_mode = #tpu.pipeline_mode<synchronous>, transform_indices = @transform_1, window_bounds = array<i64: 256, 256>}, {transform_indices = @transform_2, window_bounds = array<i64: 8, 256>}]} {
    %c0 = arith.constant 0 : index
    %c0_0 = arith.constant 0 : index
    %0 = vector.load %arg1[%c0, %c0_0] : memref<8x256xf32, #tpu.memory_space<vmem>>, vector<8x256xf32>
    %c0_1 = arith.constant 0 : index
    %c0_2 = arith.constant 0 : index
    %1 = vector.load %arg2[%c0_1, %c0_2] : memref<256x256xf32, #tpu.memory_space<vmem>>, vector<256x256xf32>
    %cst = arith.constant dense<0.000000e+00> : vector<8x256xf32>
    %2 = tpu.matmul %0, %1, %cst {dimension_numbers = #tpu.dot_dimension_numbers<[1], [0], [0], [1], [0, 0, 1, 1], [], []>} : vector<8x256xf32>, vector<256x256xf32>, vector<8x256xf32> -> vector<8x256xf32>
    %c0_3 = arith.constant 0 : index
    %c0_4 = arith.constant 0 : index
    %3 = vector.load %arg3[%c0_3, %c0_4] : memref<8x256xf32, #tpu.memory_space<vmem>>, vector<8x256xf32>
    tpu.vector_store %arg3[%c0_3, %c0_4], %2 {strides = array<i32>} : memref<8x256xf32, #tpu.memory_space<vmem>>, vector<8x256xf32>,
    return
  }
  func.func @transform_0(%arg0: i32) -> (i32, i32) {
    %c0_i32 = arith.constant 0 : i32
    %c0_i32_0 = arith.constant 0 : i32
    return %arg0, %c0_i32 : i32, i32
  }
  func.func @transform_1(%arg0: i32) -> (i32, i32) {
    %c0_i32 = arith.constant 0 : i32
    %c0_i32_0 = arith.constant 0 : i32
    %c0_i32_1 = arith.constant 0 : i32
    return %c0_i32, %c0_i32_0 : i32, i32
  }
  func.func @transform_2(%arg0: i32) -> (i32, i32) {
    %c0_i32 = arith.constant 0 : i32
    %c0_i32_0 = arith.constant 0 : i32
    return %arg0, %c0_i32 : i32, i32
  }
}

</mosaic_0001>

<llo_original>
// kernel: tpu_custom_call.1
$region0: #{tpu_custom_call.1}
  #allocation0 [shape = 'u32[]', space=smem, size = 0x4, offset = 0x4, fixed_abs, tag = 'smem constant byte address 0x4 - core index']
  #allocation1 [shape = 'u32[72,128]{1,0:T(1,128)}', space=vmem, size = 0x9000, scoped, tag = 'internal scratch']
  %s0 = inlined_call_operand.hbm [shape: f32[8,256], index: 0, kind: input, shape index: {}]
  %s1 = inlined_call_operand.hbm [shape: f32[256,256], index: 1, kind: input, shape index: {}]
  %s2 = inlined_call_operand.hbm [shape: f32[8,256], index: 2, kind: output, shape index: {}]
  %s3 = sld [smem:[#allocation0]]
  $region26: #{tpu_custom_call.1} parent=0
    _
  %s5 = ssub.s32 1, %s3
  %s6 = scalar_select 0, %s5, %s3
  $region1: #{tpu_custom_call.1} parent=0
    #allocation2 [shape = 'u8[8192]{0}', space=vmem, size = 0x2000, scoped, tag = 'input window, operand 0, single buffered']
    #allocation3 [shape = 's32[1]{0}', space=sflag, size = 0x4, scoped, tag = 'scoped memory for tpu_custom_call.1']
    #allocation4 [shape = 's32[1]{0}', space=sflag, size = 0x4, scoped, tag = 'scoped memory for tpu_custom_call.1']
    #allocation5 [shape = 'u8[262144]{0}', space=vmem, size = 0x40000, scoped, tag = 'input window, operand 1, single buffered']
    #allocation6 [shape = 's32[1]{0}', space=sflag, size = 0x4, scoped, tag = 'scoped memory for tpu_custom_call.1']
    #allocation7 [shape = 'u8[8192]{0}', space=vmem, size = 0x2000, scoped, tag = 'output window, operand 0, single buffered']
    %7 = vsyncpa [#allocation3], 0
    %8 = vsyncpa [#allocation6], 0
    %9 = vsyncpa [#allocation4], 0
    // Predicated region
    $region2: #{tpu_custom_call.1} parent=1 // pred_check
      _
    $region3: #{tpu_custom_call.1} parent=1 // pred_check_branch
      %11 = sbr.rel (0) target = $region5
    $region4: #{tpu_custom_call.1} parent=1 // pred_region
      %13 = vsyncadd [#allocation3], 0
      %s15 = sshll.u32 %s0, 4
      %s16 = int_to_ptr.hbm [resolvable:$true] %s15
      %s17 = sshll.u32 [#allocation2], 4
      %s18 = int_to_ptr.vmem [resolvable:$true] %s17
      %20 = dma.hbm_to_vmem [thread:$0]  %s16, 256, %s18, [#allocation3]
    $region5: #{tpu_custom_call.1} parent=1 // pred_fallthru
      _
    // Predicated region
    $region6: #{tpu_custom_call.1} parent=1 // pred_check
      _
    $region7: #{tpu_custom_call.1} parent=1 // pred_check_branch
      %22 = sbr.rel (0) target = $region9
    $region8: #{tpu_custom_call.1} parent=1 // pred_region
      %24 = vsyncadd [#allocation6], 0
      %s25 = sshll.u32 %s1, 4
      %s26 = int_to_ptr.hbm [resolvable:$true] %s25
      %s27 = sshll.u32 [#allocation5], 4
      %s28 = int_to_ptr.vmem [resolvable:$true] %s27
      %33 = dma.hbm_to_vmem [thread:$0]  %s26, 8192, %s28, [#allocation6], 256, 256, 16
    $region9: #{tpu_custom_call.1} parent=1 // pred_fallthru
      _
    // Predicated region
    $region10: #{tpu_custom_call.1} parent=1 // pred_check
      _
    $region11: #{tpu_custom_call.1} parent=1 // pred_check_branch
      %35 = sbr.rel (0) target = $region13
    $region12: #{tpu_custom_call.1} parent=1 // pred_region
      %37 = dma.done [#allocation3], 256
    $region13: #{tpu_custom_call.1} parent=1 // pred_fallthru
      _
    // Predicated region
    $region14: #{tpu_custom_call.1} parent=1 // pred_check
      _
    $region15: #{tpu_custom_call.1} parent=1 // pred_check_branch
      %39 = sbr.rel (0) target = $region17
    $region16: #{tpu_custom_call.1} parent=1 // pred_region
      %41 = dma.done [#allocation6], 8192
    $region17: #{tpu_custom_call.1} parent=1 // pred_fallthru
      _
    %v42 = vld [vmem:[#allocation2] sm:$0xff]
    %v43 = vld [vmem:[#allocation2 + $0x8] sm:$0xff]
    %v44 = vld [vmem:[#allocation5] sm:$0xff]
    %v45 = vld [vmem:[#allocation5 + $0x8] sm:$0xff]
    %v46 = vld [vmem:[#allocation5 + $0x10] sm:$0xff]
    %v47 = vld [vmem:[#allocation5 + $0x18] sm:$0xff]
    %v48 = vld [vmem:[#allocation5 + $0x20] sm:$0xff]
    %v49 = vld [vmem:[#allocation5 + $0x28] sm:$0xff]
    %v50 = vld [vmem:[#allocation5 + $0x30] sm:$0xff]
    %v51 = vld [vmem:[#allocation5 + $0x38] sm:$0xff]
    %v52 = vld [vmem:[#allocation5 + $0x40] sm:$0xff]
    %v53 = vld [vmem:[#allocation5 + $0x48] sm:$0xff]
    %v54 = vld [vmem:[#allocation5 + $0x50] sm:$0xff]
    %v55 = vld [vmem:[#allocation5 + $0x58] sm:$0xff]
    %v56 = vld [vmem:[#allocation5 + $0x60] sm:$0xff]
    %v57 = vld [vmem:[#allocation5 + $0x68] sm:$0xff]
    %v58 = vld [vmem:[#allocation5 + $0x70] sm:$0xff]
    %v59 = vld [vmem:[#allocation5 + $0x78] sm:$0xff]
    %v60 = vld [vmem:[#allocation5 + $0x80] sm:$0xff]
    %v61 = vld [vmem:[#allocation5 + $0x88] sm:$0xff]
    %v62 = vld [vmem:[#allocation5 + $0x90] sm:$0xff]
    %v63 = vld [vmem:[#allocation5 + $0x98] sm:$0xff]
    %v64 = vld [vmem:[#allocation5 + $0xa0] sm:$0xff]
    %v65 = vld [vmem:[#allocation5 + $0xa8] sm:$0xff]
    %v66 = vld [vmem:[#allocation5 + $0xb0] sm:$0xff]
    %v67 = vld [vmem:[#allocation5 + $0xb8] sm:$0xff]
    %v68 = vld [vmem:[#allocation5 + $0xc0] sm:$0xff]
    %v69 = vld [vmem:[#allocation5 + $0xc8] sm:$0xff]
    %v70 = vld [vmem:[#allocation5 + $0xd0] sm:$0xff]
    %v71 = vld [vmem:[#allocation5 + $0xd8] sm:$0xff]
    %v72 = vld [vmem:[#allocation5 + $0xe0] sm:$0xff]
    %v73 = vld [vmem:[#allocation5 + $0xe8] sm:$0xff]
    %v74 = vld [vmem:[#allocation5 + $0xf0] sm:$0xff]
    %v75 = vld [vmem:[#allocation5 + $0xf8] sm:$0xff]
    %v76 = vld [vmem:[#allocation5 + $0x100] sm:$0xff]
    %v77 = vld [vmem:[#allocation5 + $0x108] sm:$0xff]
    %v78 = vld [vmem:[#allocation5 + $0x110] sm:$0xff]
    %v79 = vld [vmem:[#allocation5 + $0x118] sm:$0xff]
    %v80 = vld [vmem:[#allocation5 + $0x120] sm:$0xff]
    %v81 = vld [vmem:[#allocation5 + $0x128] sm:$0xff]
    %v82 = vld [vmem:[#allocation5 + $0x130] sm:$0xff]
    %v83 = vld [vmem:[#allocation5 + $0x138] sm:$0xff]
    %v84 = vld [vmem:[#allocation5 + $0x140] sm:$0xff]
    %v85 = vld [vmem:[#allocation5 + $0x148] sm:$0xff]
    %v86 = vld [vmem:[#allocation5 + $0x150] sm:$0xff]
    %v87 = vld [vmem:[#allocation5 + $0x158] sm:$0xff]
    %v88 = vld [vmem:[#allocation5 + $0x160] sm:$0xff]
    %v89 = vld [vmem:[#allocation5 + $0x168] sm:$0xff]
    %v90 = vld [vmem:[#allocation5 + $0x170] sm:$0xff]
    %v91 = vld [vmem:[#allocation5 + $0x178] sm:$0xff]
    %v92 = vld [vmem:[#allocation5 + $0x180] sm:$0xff]
    %v93 = vld [vmem:[#allocation5 + $0x188] sm:$0xff]
    %v94 = vld [vmem:[#allocation5 + $0x190] sm:$0xff]
    %v95 = vld [vmem:[#allocation5 + $0x198] sm:$0xff]
    %v96 = vld [vmem:[#allocation5 + $0x1a0] sm:$0xff]
    %v97 = vld [vmem:[#allocation5 + $0x1a8] sm:$0xff]
    %v98 = vld [vmem:[#allocation5 + $0x1b0] sm:$0xff]
    %v99 = vld [vmem:[#allocation5 + $0x1b8] sm:$0xff]
    %v100 = vld [vmem:[#allocation5 + $0x1c0] sm:$0xff]
    %v101 = vld [vmem:[#allocation5 + $0x1c8] sm:$0xff]
    %v102 = vld [vmem:[#allocation5 + $0x1d0] sm:$0xff]
    %v103 = vld [vmem:[#allocation5 + $0x1d8] sm:$0xff]
    %v104 = vld [vmem:[#allocation5 + $0x1e0] sm:$0xff]
    %v105 = vld [vmem:[#allocation5 + $0x1e8] sm:$0xff]
    %v106 = vld [vmem:[#allocation5 + $0x1f0] sm:$0xff]
    %v107 = vld [vmem:[#allocation5 + $0x1f8] sm:$0xff]
    %108 = vmatpush.msra.mxu0 %v74
    %109 = vmatpush.msra.mxu0 %v72
    %110 = vmatpush.msra.mxu0 %v70
    %111 = vmatpush.msra.mxu0 %v68
    %112 = vmatpush.msra.mxu0 %v66
    %113 = vmatpush.msra.mxu0 %v64
    %114 = vmatpush.msra.mxu0 %v62
    %115 = vmatpush.msra.mxu0 %v60
    %116 = vmatpush.msra.mxu0 %v58
    %117 = vmatpush.msra.mxu0 %v56
    %118 = vmatpush.msra.mxu0 %v54
    %119 = vmatpush.msra.mxu0 %v52
    %120 = vmatpush.msra.mxu0 %v50
    %121 = vmatpush.msra.mxu0 %v48
    %122 = vmatpush.msra.mxu0 %v46
    %123 = vmatpush.msra.mxu0 %v44
    %124 = vmatmul.f32.gmra.mxu0 %v42
    %v125 = vpop.f32.mrf.mxu0
    %v126 = vadd.f32 0.0, %v125
    %127 = vdwg.mxu0
    %128 = vmatpush.msra.mxu0 %v106
    %129 = vmatpush.msra.mxu0 %v104
    %130 = vmatpush.msra.mxu0 %v102
    %131 = vmatpush.msra.mxu0 %v100
    %132 = vmatpush.msra.mxu0 %v98
    %133 = vmatpush.msra.mxu0 %v96
    %134 = vmatpush.msra.mxu0 %v94
    %135 = vmatpush.msra.mxu0 %v92
    %136 = vmatpush.msra.mxu0 %v90
    %137 = vmatpush.msra.mxu0 %v88
    %138 = vmatpush.msra.mxu0 %v86
    %139 = vmatpush.msra.mxu0 %v84
    %140 = vmatpush.msra.mxu0 %v82
    %141 = vmatpush.msra.mxu0 %v80
    %142 = vmatpush.msra.mxu0 %v78
    %143 = vmatpush.msra.mxu0 %v76
    %144 = vmatmul.f32.gmra.mxu0 %v43
    %v145 = vpop.f32.mrf.mxu0
    %v146 = vadd.f32 %v126, %v145
    %147 = vdwg.mxu0
    %148 = vmatpush.msra.mxu0 %v75
    %149 = vmatpush.msra.mxu0 %v73
    %150 = vmatpush.msra.mxu0 %v71
    %151 = vmatpush.msra.mxu0 %v69
    %152 = vmatpush.msra.mxu0 %v67
    %153 = vmatpush.msra.mxu0 %v65
    %154 = vmatpush.msra.mxu0 %v63
    %155 = vmatpush.msra.mxu0 %v61
    %156 = vmatpush.msra.mxu0 %v59
    %157 = vmatpush.msra.mxu0 %v57
    %158 = vmatpush.msra.mxu0 %v55
    %159 = vmatpush.msra.mxu0 %v53
    %160 = vmatpush.msra.mxu0 %v51
    %161 = vmatpush.msra.mxu0 %v49
    %162 = vmatpush.msra.mxu0 %v47
    %163 = vmatpush.msra.mxu0 %v45
    %164 = vmatmul.f32.gmra.mxu0 %v42
    %v165 = vpop.f32.mrf.mxu0
    %v166 = vadd.f32 0.0, %v165
    %167 = vdwg.mxu0
    %168 = vmatpush.msra.mxu0 %v107
    %169 = vmatpush.msra.mxu0 %v105
    %170 = vmatpush.msra.mxu0 %v103
    %171 = vmatpush.msra.mxu0 %v101
    %172 = vmatpush.msra.mxu0 %v99
    %173 = vmatpush.msra.mxu0 %v97
    %174 = vmatpush.msra.mxu0 %v95
    %175 = vmatpush.msra.mxu0 %v93
    %176 = vmatpush.msra.mxu0 %v91
    %177 = vmatpush.msra.mxu0 %v89
    %178 = vmatpush.msra.mxu0 %v87
    %179 = vmatpush.msra.mxu0 %v85
    %180 = vmatpush.msra.mxu0 %v83
    %181 = vmatpush.msra.mxu0 %v81
    %182 = vmatpush.msra.mxu0 %v79
    %183 = vmatpush.msra.mxu0 %v77
    %184 = vmatmul.f32.gmra.mxu0 %v43
    %v185 = vpop.f32.mrf.mxu0
    %v186 = vadd.f32 %v166, %v185
    %187 = vdwg.mxu0
    %188 = vst [vmem:[#allocation7] sm:$0xff] %v146
    %189 = vst [vmem:[#allocation7 + $0x8] sm:$0xff] %v186
    // Predicated region
    $region18: #{tpu_custom_call.1} parent=1 // pred_check
      _
    $region19: #{tpu_custom_call.1} parent=1 // pred_check_branch
      %191 = sbr.rel (0) target = $region21
    $region20: #{tpu_custom_call.1} parent=1 // pred_region
      %193 = vsyncadd [#allocation4], 0
      %s195 = sshll.u32 [#allocation7], 4
      %s196 = int_to_ptr.vmem [resolvable:$true] %s195
      %s197 = sshll.u32 %s2, 4
      %s198 = int_to_ptr.hbm [resolvable:$true] %s197
      %200 = dma.vmem_to_hbm [thread:$0]  %s196, 256, %s198, [#allocation4]
    $region21: #{tpu_custom_call.1} parent=1 // pred_fallthru
      _
    // Predicated region
    $region22: #{tpu_custom_call.1} parent=1 // pred_check
      _
    $region23: #{tpu_custom_call.1} parent=1 // pred_check_branch
      %202 = sbr.rel (0) target = $region25
    $region24: #{tpu_custom_call.1} parent=1 // pred_region
      %204 = dma.done [#allocation4], 256
    $region25: #{tpu_custom_call.1} parent=1 // pred_fallthru
      _
    %205 = vsyncpa [#allocation3], 1
    %206 = vsyncpa [#allocation6], 1
    %207 = vsyncpa [#allocation4], 1

</llo_original>
